<compile_context>
chip_gen: v7x
topology: tpu7x:2x2x1
jax: 0.10.0
libtpu: 0.0.40
codegen_flags: <defaults>
</compile_context>

<pallas_src>
from functools import partial

import jax
import jax.numpy as jnp
from jax.experimental import pallas as pl
from jax.experimental.pallas import tpu as pltpu

HIDDEN = 256
LANES = 128


def _round_up(x, m):
    return ((x + m - 1) // m) * m


def fc_q_kernel(num_actions, head_pad, pack_tight,
                state_ref, w1_ref, q2_w_ref, q3_w_ref, i2_w_ref, i3_w_ref,
                bias_ref, out_ref):
    x = state_ref[...]                                     # already bf16 (wrapper)

    # Static, lane-aligned slices of the fused bias row (free).
    b1   = bias_ref[:, 0:2 * HIDDEN]                       # [q1_b | i1_b]
    q2_b = bias_ref[:, 2 * HIDDEN:3 * HIDDEN]
    i2_b = bias_ref[:, 3 * HIDDEN:4 * HIDDEN]
    q3_b = bias_ref[:, 4 * HIDDEN:4 * HIDDEN + head_pad]
    i3_b = bias_ref[:, 4 * HIDDEN + head_pad:4 * HIDDEN + 2 * head_pad]

    # ---- fused layer 1: [q1 | i1] in a single MXU pass, f32 accumulation ----
    h1 = jnp.dot(x, w1_ref[...], preferred_element_type=jnp.float32) + b1
    h1 = jnp.maximum(h1, 0.0)
    qh = h1[:, :HIDDEN].astype(jnp.bfloat16)               # lane-tile-aligned split
    ih = h1[:, HIDDEN:].astype(jnp.bfloat16)

    # ---- Q branch: relu(q2) -> q3 (no activation) ----
    q = jnp.dot(qh, q2_w_ref[...], preferred_element_type=jnp.float32) + q2_b
    q = jnp.maximum(q, 0.0).astype(jnp.bfloat16)
    q_out = jnp.dot(q, q3_w_ref[...], preferred_element_type=jnp.float32) + q3_b

    # ---- i branch: relu(i2) -> relu(i3) ----
    i = jnp.dot(ih, i2_w_ref[...], preferred_element_type=jnp.float32) + i2_b
    i = jnp.maximum(i, 0.0).astype(jnp.bfloat16)
    i = jnp.dot(i, i3_w_ref[...], preferred_element_type=jnp.float32) + i3_b
    i = jnp.maximum(i, 0.0)

    # ---- log_softmax over the REAL action lanes only (padded lanes masked out) ----
    lane = jax.lax.broadcasted_iota(jnp.int32, i.shape, 1)
    zi = jnp.where(lane < num_actions, i, -1e30)
    m = jnp.max(zi, axis=1, keepdims=True)
    z = zi - m
    lse = jnp.log(jnp.sum(jnp.exp(z), axis=1, keepdims=True))
    log_imt = z - lse

    if pack_tight:
        # Pack the three heads into ONE 128-lane block:
        #   q_out -> lanes [0, NA), log_imt -> [NA, 2NA), i -> [2NA, 3NA), zeros after.
        # The rolls land in XLU slots (slack under the MXU); the single unmasked
        # store cuts output HBM traffic 3x vs three separately padded outputs.
        na = num_actions
        packed = jnp.where(
            lane < na, q_out,
            jnp.where(lane < 2 * na, pltpu.roll(log_imt, shift=na, axis=1),
                      jnp.where(lane < 3 * na, pltpu.roll(i, shift=2 * na, axis=1),
                                0.0)))
        out_ref[...] = packed
    else:
        # Heads too wide for one 128-lane block: lane-tile-aligned concat layout,
        # still one fused output (one DMA stream instead of three).
        out_ref[:, 0:head_pad] = q_out
        out_ref[:, head_pad:2 * head_pad] = log_imt
        out_ref[:, 2 * head_pad:3 * head_pad] = i


def init_linear(key, fan_in, fan_out):
    """PyTorch-style uniform(-1/sqrt(fan_in), 1/sqrt(fan_in)) init.
    Weight returned as (fan_in, fan_out); bias as (1, fan_out)."""
    kw, kb = jax.random.split(key)
    bound = 1.0 / jnp.sqrt(jnp.float32(fan_in))
    w = jax.random.uniform(kw, (fan_in, fan_out), jnp.float32, -bound, bound)
    b = jax.random.uniform(kb, (1, fan_out), jnp.float32, -bound, bound)
    return w, b


def pack_params(params, weight_dtype=jnp.bfloat16):
    """Fuse layer-1 weights, pad heads to 128 lanes, fuse all biases into one row,
    cast weights to bf16.  Returns (arrays, meta)."""
    num_actions = params["q3"][0].shape[1]
    head_pad = _round_up(max(num_actions, 1), LANES)
    pack_tight = 3 * num_actions <= LANES
    out_lanes = LANES if pack_tight else 3 * head_pad
    offsets = ((0, num_actions, 2 * num_actions) if pack_tight
               else (0, head_pad, 2 * head_pad))

    q1_w, q1_b = params["q1"]
    i1_w, i1_b = params["i1"]
    w1 = jnp.concatenate([q1_w, i1_w], axis=1).astype(weight_dtype)

    def pad_head(w, b):
        wp = jnp.zeros((w.shape[0], head_pad), jnp.float32).at[:, :num_actions].set(w)
        bp = jnp.zeros((1, head_pad), jnp.float32).at[:, :num_actions].set(b)
        return wp.astype(weight_dtype), bp

    q3_w, q3_b = pad_head(*params["q3"])
    i3_w, i3_b = pad_head(*params["i3"])

    # Bias layout (must match kernel slices): [q1_b|i1_b | q2_b | i2_b | q3_b | i3_b]
    bias = jnp.concatenate(
        [q1_b, i1_b, params["q2"][1], params["i2"][1], q3_b, i3_b],
        axis=1).astype(jnp.float32)

    arrays = dict(
        w1=w1,
        q2_w=params["q2"][0].astype(weight_dtype),
        q3_w=q3_w,
        i2_w=params["i2"][0].astype(weight_dtype),
        i3_w=i3_w,
        bias=bias,
    )
    meta = dict(num_actions=num_actions, head_pad=head_pad, pack_tight=pack_tight,
                out_lanes=out_lanes, offsets=offsets, bias_len=bias.shape[1])
    return arrays, meta


def fc_q_forward(state, params, *, batch_tile=512, core_parallel=False):
    arrays, meta = pack_params(params)
    num_actions = meta["num_actions"]
    head_pad = meta["head_pad"]
    out_lanes = meta["out_lanes"]
    o_q, o_l, o_i = meta["offsets"]

    B, state_dim = state.shape

    # Batch tiling: sublane-align small batches (block == full dim, always legal);
    # tile large batches at batch_tile (multiple of 256 for the v6e/v7x MXU, also a
    # 128-multiple for v5e).  With core_parallel keep >=2 grid steps for the TC split.
    if B <= batch_tile:
        tb = max(8, _round_up(B, 8))
    else:
        tb = batch_tile
    if core_parallel and B >= 32 and _round_up(B, tb) // tb < 2:
        tb = max(16, _round_up(pl.cdiv(B, 2), 16))   # 16-align for bf16 sublane packing
    b_pad = _round_up(B, tb)

    # Cast to bf16 in the wrapper (half the state DMA bytes); pad only when needed.
    state_bf = state.astype(jnp.bfloat16)
    if b_pad != B:
        state_bf = jnp.pad(state_bf, ((0, b_pad - B), (0, 0)))

    grid = (b_pad // tb,)
    const = lambda i: (0, 0)     # weights/bias: VMEM-resident across grid steps
    batch = lambda i: (i, 0)     # activations/output: tiled over the batch

    in_specs = [
        pl.BlockSpec((tb, state_dim), batch),            # state tile (bf16)
        pl.BlockSpec((state_dim, 2 * HIDDEN), const),    # fused [q1|i1] weight
        pl.BlockSpec((HIDDEN, HIDDEN), const),           # q2_w
        pl.BlockSpec((HIDDEN, head_pad), const),         # q3_w (lane-padded)
        pl.BlockSpec((HIDDEN, HIDDEN), const),           # i2_w
        pl.BlockSpec((HIDDEN, head_pad), const),         # i3_w (lane-padded)
        pl.BlockSpec((1, meta["bias_len"]), const),      # all biases, fused
    ]
    out_specs = pl.BlockSpec((tb, out_lanes), batch)
    out_shape = jax.ShapeDtypeStruct((b_pad, out_lanes), jnp.float32)

    semantics = (pltpu.CORE_PARALLEL,) if core_parallel else ("parallel",)

    out = pl.pallas_call(
        partial(fc_q_kernel, num_actions, head_pad, meta["pack_tight"]),
        out_shape=out_shape,
        grid=grid,
        in_specs=in_specs,
        out_specs=out_specs,
        compiler_params=pltpu.CompilerParams(dimension_semantics=semantics),
    )(state_bf, arrays["w1"], arrays["q2_w"], arrays["q3_w"],
      arrays["i2_w"], arrays["i3_w"], arrays["bias"])

    # Slice the three heads out of the single lane-packed output.
    return (out[:B, o_q:o_q + num_actions],
            out[:B, o_l:o_l + num_actions],
            out[:B, o_i:o_i + num_actions])


def fc_q_reference(state, params, weight_dtype=jnp.bfloat16):
    """Pure-JAX reference with the SAME numerics as the kernel
    (bf16 matmul inputs, f32 accumulation, f32 bias/ReLU/log_softmax)."""
    def lin(x, name):
        w, b = params[name]
        return jnp.dot(x.astype(weight_dtype), w.astype(weight_dtype),
                       preferred_element_type=jnp.float32) + b.astype(jnp.float32)

    q = jax.nn.relu(lin(state, "q1"))
    q = jax.nn.relu(lin(q, "q2"))
    q_out = lin(q, "q3")

    i = jax.nn.relu(lin(state, "i1"))
    i = jax.nn.relu(lin(i, "i2"))
    i = jax.nn.relu(lin(i, "i3"))
    return q_out, jax.nn.log_softmax(i, axis=1), i


if __name__ == "__main__":
    # Small, deterministic shapes consistent with the module:
    # state_dim=16, num_actions=8, batch=8 (sublane-aligned).
    B, STATE_DIM, NUM_ACTIONS = 8, 16, 8

    key = jax.random.PRNGKey(0)
    keys = jax.random.split(key, 7)

    params = {
        "q1": init_linear(keys[0], STATE_DIM, HIDDEN),
        "q2": init_linear(keys[1], HIDDEN, HIDDEN),
        "q3": init_linear(keys[2], HIDDEN, NUM_ACTIONS),
        "i1": init_linear(keys[3], STATE_DIM, HIDDEN),
        "i2": init_linear(keys[4], HIDDEN, HIDDEN),
        "i3": init_linear(keys[5], HIDDEN, NUM_ACTIONS),
    }

    state = jax.random.normal(keys[6], (B, STATE_DIM), jnp.float32)

    q_out, log_imt, i_out = fc_q_forward(state, params)
    jax.block_until_ready((q_out, log_imt, i_out))

    assert q_out.shape == (B, NUM_ACTIONS)
    assert log_imt.shape == (B, NUM_ACTIONS)
    assert i_out.shape == (B, NUM_ACTIONS)

    # Correctness check against a reference with matching (bf16-weight) numerics.
    q_ref, log_imt_ref, i_ref = fc_q_reference(state, params)
    assert jnp.allclose(q_out, q_ref, atol=2e-3, rtol=2e-3)
    assert jnp.allclose(log_imt, log_imt_ref, atol=2e-3, rtol=2e-3)
    assert jnp.allclose(i_out, i_ref, atol=2e-3, rtol=2e-3)

    print("KERNEL_OK")
</pallas_src>

<mosaic_0001>
module attributes {stable_mosaic.version = 11 : i64} {
  func.func @fc_q_kernel(%arg0: i32, %arg1: memref<8x16xbf16, #tpu.memory_space<vmem>>, %arg2: memref<16x512xbf16, #tpu.memory_space<vmem>>, %arg3: memref<256x256xbf16, #tpu.memory_space<vmem>>, %arg4: memref<256x128xbf16, #tpu.memory_space<vmem>>, %arg5: memref<256x256xbf16, #tpu.memory_space<vmem>>, %arg6: memref<256x128xbf16, #tpu.memory_space<vmem>>, %arg7: memref<1x1280xf32, #tpu.memory_space<vmem>>, %arg8: memref<8x128xf32, #tpu.memory_space<vmem>>) attributes {dimension_semantics = [#tpu.dimension_semantics<parallel>], iteration_bounds = array<i64: 1>, scalar_prefetch = 0 : i64, scratch_operands = 0 : i64, tpu.core_type = #tpu.core_type<tc>, window_params = [{transform_indices = @transform_0, window_bounds = array<i64: 8, 16>}, {pipeline_mode = #tpu.pipeline_mode<synchronous>, transform_indices = @transform_1, window_bounds = array<i64: 16, 512>}, {pipeline_mode = #tpu.pipeline_mode<synchronous>, transform_indices = @transform_2, window_bounds = array<i64: 256, 256>}, {pipeline_mode = #tpu.pipeline_mode<synchronous>, transform_indices = @transform_3, window_bounds = array<i64: 256, 128>}, {pipeline_mode = #tpu.pipeline_mode<synchronous>, transform_indices = @transform_4, window_bounds = array<i64: 256, 256>}, {pipeline_mode = #tpu.pipeline_mode<synchronous>, transform_indices = @transform_5, window_bounds = array<i64: 256, 128>}, {pipeline_mode = #tpu.pipeline_mode<synchronous>, transform_indices = @transform_6, window_bounds = array<i64: 1, 1280>}, {transform_indices = @transform_7, window_bounds = array<i64: 8, 128>}]} {
    %c0 = arith.constant 0 : index
    %c0_0 = arith.constant 0 : index
    %0 = vector.load %arg1[%c0, %c0_0] : memref<8x16xbf16, #tpu.memory_space<vmem>>, vector<8x16xbf16>
    %c0_1 = arith.constant 0 : index
    %c0_2 = arith.constant 0 : index
    %1 = vector.load %arg7[%c0_1, %c0_2] : memref<1x1280xf32, #tpu.memory_space<vmem>>, vector<1x512xf32>
    %c0_3 = arith.constant 0 : index
    %c512 = arith.constant 512 : index
    %2 = vector.load %arg7[%c0_3, %c512] : memref<1x1280xf32, #tpu.memory_space<vmem>>, vector<1x256xf32>
    %c0_4 = arith.constant 0 : index
    %c768 = arith.constant 768 : index
    %3 = vector.load %arg7[%c0_4, %c768] : memref<1x1280xf32, #tpu.memory_space<vmem>>, vector<1x256xf32>
    %c0_5 = arith.constant 0 : index
    %c1024 = arith.constant 1024 : index
    %4 = vector.load %arg7[%c0_5, %c1024] : memref<1x1280xf32, #tpu.memory_space<vmem>>, vector<1x128xf32>
    %c0_6 = arith.constant 0 : index
    %c1152 = arith.constant 1152 : index
    %5 = vector.load %arg7[%c0_6, %c1152] : memref<1x1280xf32, #tpu.memory_space<vmem>>, vector<1x128xf32>
    %c0_7 = arith.constant 0 : index
    %c0_8 = arith.constant 0 : index
    %6 = vector.load %arg2[%c0_7, %c0_8] : memref<16x512xbf16, #tpu.memory_space<vmem>>, vector<16x512xbf16>
    %cst = arith.constant dense<0.000000e+00> : vector<8x512xf32>
    %7 = tpu.matmul %0, %6, %cst {dimension_numbers = #tpu.dot_dimension_numbers<[1], [0], [0], [1], [0, 0, 1, 1], [], []>} : vector<8x16xbf16>, vector<16x512xbf16>, vector<8x512xf32> -> vector<8x512xf32>
    %8 = vector.broadcast %1 : vector<1x512xf32> to vector<8x512xf32>
    %9 = arith.addf %7, %8 : vector<8x512xf32>
    %cst_9 = arith.constant 0.000000e+00 : f32
    %10 = vector.broadcast %cst_9 : f32 to vector<8x512xf32>
    %11 = arith.maximumf %9, %10 : vector<8x512xf32>
    %12 = vector.extract_strided_slice %11 {offsets = [0, 0], sizes = [8, 256], strides = [1, 1]} : vector<8x512xf32> to vector<8x256xf32>
    %13 = arith.truncf %12 : vector<8x256xf32> to vector<8x256xbf16>
    %14 = vector.extract_strided_slice %11 {offsets = [0, 256], sizes = [8, 256], strides = [1, 1]} : vector<8x512xf32> to vector<8x256xf32>
    %15 = arith.truncf %14 : vector<8x256xf32> to vector<8x256xbf16>
    %c0_10 = arith.constant 0 : index
    %c0_11 = arith.constant 0 : index
    %16 = vector.load %arg3[%c0_10, %c0_11] : memref<256x256xbf16, #tpu.memory_space<vmem>>, vector<256x256xbf16>
    %cst_12 = arith.constant dense<0.000000e+00> : vector<8x256xf32>
    %17 = tpu.matmul %13, %16, %cst_12 {dimension_numbers = #tpu.dot_dimension_numbers<[1], [0], [0], [1], [0, 0, 1, 1], [], []>} : vector<8x256xbf16>, vector<256x256xbf16>, vector<8x256xf32> -> vector<8x256xf32>
    %18 = vector.broadcast %2 : vector<1x256xf32> to vector<8x256xf32>
    %19 = arith.addf %17, %18 : vector<8x256xf32>
    %cst_13 = arith.constant 0.000000e+00 : f32
    %20 = vector.broadcast %cst_13 : f32 to vector<8x256xf32>
    %21 = arith.maximumf %19, %20 : vector<8x256xf32>
    %22 = arith.truncf %21 : vector<8x256xf32> to vector<8x256xbf16>
    %c0_14 = arith.constant 0 : index
    %c0_15 = arith.constant 0 : index
    %23 = vector.load %arg4[%c0_14, %c0_15] : memref<256x128xbf16, #tpu.memory_space<vmem>>, vector<256x128xbf16>
    %cst_16 = arith.constant dense<0.000000e+00> : vector<8x128xf32>
    %24 = tpu.matmul %22, %23, %cst_16 {dimension_numbers = #tpu.dot_dimension_numbers<[1], [0], [0], [1], [0, 0, 1, 1], [], []>} : vector<8x256xbf16>, vector<256x128xbf16>, vector<8x128xf32> -> vector<8x128xf32>
    %25 = vector.broadcast %4 : vector<1x128xf32> to vector<8x128xf32>
    %26 = arith.addf %24, %25 : vector<8x128xf32>
    %c0_17 = arith.constant 0 : index
    %c0_18 = arith.constant 0 : index
    %27 = vector.load %arg5[%c0_17, %c0_18] : memref<256x256xbf16, #tpu.memory_space<vmem>>, vector<256x256xbf16>
    %cst_19 = arith.constant dense<0.000000e+00> : vector<8x256xf32>
    %28 = tpu.matmul %15, %27, %cst_19 {dimension_numbers = #tpu.dot_dimension_numbers<[1], [0], [0], [1], [0, 0, 1, 1], [], []>} : vector<8x256xbf16>, vector<256x256xbf16>, vector<8x256xf32> -> vector<8x256xf32>
    %29 = vector.broadcast %3 : vector<1x256xf32> to vector<8x256xf32>
    %30 = arith.addf %28, %29 : vector<8x256xf32>
    %cst_20 = arith.constant 0.000000e+00 : f32
    %31 = vector.broadcast %cst_20 : f32 to vector<8x256xf32>
    %32 = arith.maximumf %30, %31 : vector<8x256xf32>
    %33 = arith.truncf %32 : vector<8x256xf32> to vector<8x256xbf16>
    %c0_21 = arith.constant 0 : index
    %c0_22 = arith.constant 0 : index
    %34 = vector.load %arg6[%c0_21, %c0_22] : memref<256x128xbf16, #tpu.memory_space<vmem>>, vector<256x128xbf16>
    %cst_23 = arith.constant dense<0.000000e+00> : vector<8x128xf32>
    %35 = tpu.matmul %33, %34, %cst_23 {dimension_numbers = #tpu.dot_dimension_numbers<[1], [0], [0], [1], [0, 0, 1, 1], [], []>} : vector<8x256xbf16>, vector<256x128xbf16>, vector<8x128xf32> -> vector<8x128xf32>
    %36 = vector.broadcast %5 : vector<1x128xf32> to vector<8x128xf32>
    %37 = arith.addf %35, %36 : vector<8x128xf32>
    %cst_24 = arith.constant 0.000000e+00 : f32
    %38 = vector.broadcast %cst_24 : f32 to vector<8x128xf32>
    %39 = arith.maximumf %37, %38 : vector<8x128xf32>
    %40 = tpu.iota {dimensions = array<i32: 1>} : vector<8x128xi32>
    %c8_i32 = arith.constant 8 : i32
    %41 = vector.broadcast %c8_i32 : i32 to vector<8x128xi32>
    %42 = arith.cmpi slt, %40, %41 : vector<8x128xi32>
    %cst_25 = arith.constant -1.000000e+30 : f32
    %43 = vector.broadcast %cst_25 : f32 to vector<8x128xf32>
    %44 = arith.select %42, %39, %43 : vector<8x128xi1>, vector<8x128xf32>
    %cst_26 = arith.constant dense<0xFF800000> : vector<8xf32>
    %45 = vector.multi_reduction <maximumf>, %44, %cst_26 [1] : vector<8x128xf32> to vector<8xf32>
    %46 = vector.shape_cast %45 : vector<8xf32> to vector<8x1xf32>
    %47 = vector.broadcast %46 : vector<8x1xf32> to vector<8x128xf32>
    %48 = arith.subf %44, %47 : vector<8x128xf32>
    %49 = math.exp %48 : vector<8x128xf32>
    %cst_27 = arith.constant dense<0.000000e+00> : vector<8xf32>
    %50 = vector.multi_reduction <add>, %49, %cst_27 [1] : vector<8x128xf32> to vector<8xf32>
    %51 = vector.shape_cast %50 : vector<8xf32> to vector<8x1xf32>
    %52 = math.log %51 : vector<8x1xf32>
    %53 = vector.broadcast %52 : vector<8x1xf32> to vector<8x128xf32>
    %54 = arith.subf %48, %53 : vector<8x128xf32>
    %c8_i32_28 = arith.constant 8 : i32
    %55 = vector.broadcast %c8_i32_28 : i32 to vector<8x128xi32>
    %56 = arith.cmpi slt, %40, %55 : vector<8x128xi32>
    %c16_i32 = arith.constant 16 : i32
    %57 = vector.broadcast %c16_i32 : i32 to vector<8x128xi32>
    %58 = arith.cmpi slt, %40, %57 : vector<8x128xi32>
    %c8_i32_29 = arith.constant 8 : i32
    %59 = tpu.dynamic_rotate %54 by %c8_i32_29 dim 1 : vector<8x128xf32>, i32 -> vector<8x128xf32>
    %c24_i32 = arith.constant 24 : i32
    %60 = vector.broadcast %c24_i32 : i32 to vector<8x128xi32>
    %61 = arith.cmpi slt, %40, %60 : vector<8x128xi32>
    %c16_i32_30 = arith.constant 16 : i32
    %62 = tpu.dynamic_rotate %39 by %c16_i32_30 dim 1 : vector<8x128xf32>, i32 -> vector<8x128xf32>
    %cst_31 = arith.constant 0.000000e+00 : f32
    %63 = vector.broadcast %cst_31 : f32 to vector<8x128xf32>
    %64 = arith.select %61, %62, %63 : vector<8x128xi1>, vector<8x128xf32>
    %65 = arith.select %58, %59, %64 : vector<8x128xi1>, vector<8x128xf32>
    %66 = arith.select %56, %26, %65 : vector<8x128xi1>, vector<8x128xf32>
    %c0_32 = arith.constant 0 : index
    %c0_33 = arith.constant 0 : index
    %67 = vector.load %arg8[%c0_32, %c0_33] : memref<8x128xf32, #tpu.memory_space<vmem>>, vector<8x128xf32>
    tpu.vector_store %arg8[%c0_32, %c0_33], %66 {strides = array<i32>} : memref<8x128xf32, #tpu.memory_space<vmem>>, vector<8x128xf32>,
    return
  }
  func.func @transform_0(%arg0: i32) -> (i32, i32) {
    %c0_i32 = arith.constant 0 : i32
    %c0_i32_0 = arith.constant 0 : i32
    return %arg0, %c0_i32 : i32, i32
  }
  func.func @transform_1(%arg0: i32) -> (i32, i32) {
    %c0_i32 = arith.constant 0 : i32
    %c0_i32_0 = arith.constant 0 : i32
    %c0_i32_1 = arith.constant 0 : i32
    return %c0_i32, %c0_i32_0 : i32, i32
  }
  func.func @transform_2(%arg0: i32) -> (i32, i32) {
    %c0_i32 = arith.constant 0 : i32
    %c0_i32_0 = arith.constant 0 : i32
    %c0_i32_1 = arith.constant 0 : i32
    return %c0_i32, %c0_i32_0 : i32, i32
  }
  func.func @transform_3(%arg0: i32) -> (i32, i32) {
    %c0_i32 = arith.constant 0 : i32
    %c0_i32_0 = arith.constant 0 : i32
    %c0_i32_1 = arith.constant 0 : i32
    return %c0_i32, %c0_i32_0 : i32, i32
  }
  func.func @transform_4(%arg0: i32) -> (i32, i32) {
    %c0_i32 = arith.constant 0 : i32
    %c0_i32_0 = arith.constant 0 : i32
    %c0_i32_1 = arith.constant 0 : i32
    return %c0_i32, %c0_i32_0 : i32, i32
  }
  func.func @transform_5(%arg0: i32) -> (i32, i32) {
    %c0_i32 = arith.constant 0 : i32
    %c0_i32_0 = arith.constant 0 : i32
    %c0_i32_1 = arith.constant 0 : i32
    return %c0_i32, %c0_i32_0 : i32, i32
  }
  func.func @transform_6(%arg0: i32) -> (i32, i32) {
    %c0_i32 = arith.constant 0 : i32
    %c0_i32_0 = arith.constant 0 : i32
    %c0_i32_1 = arith.constant 0 : i32
    return %c0_i32, %c0_i32_0 : i32, i32
  }
  func.func @transform_7(%arg0: i32) -> (i32, i32) {
    %c0_i32 = arith.constant 0 : i32
    %c0_i32_0 = arith.constant 0 : i32
    return %arg0, %c0_i32 : i32, i32
  }
}

</mosaic_0001>

<llo_original>
// kernel: tpu_custom_call.1
$region0: #{tpu_custom_call.1}
  #allocation0 [shape = 'u32[]', space=smem, size = 0x4, offset = 0x4, fixed_abs, tag = 'smem constant byte address 0x4 - core index']
  #allocation1 [shape = 'u32[144,128]{1,0:T(1,128)}', space=vmem, size = 0x12000, scoped, tag = 'internal scratch']
  %s0 = inlined_call_operand.hbm [shape: bf16[8,16], index: 0, kind: input, shape index: {}]
  %s1 = inlined_call_operand.hbm [shape: bf16[16,512], index: 1, kind: input, shape index: {}]
  %s2 = inlined_call_operand.hbm [shape: bf16[256,256], index: 2, kind: input, shape index: {}]
  %s3 = inlined_call_operand.hbm [shape: bf16[256,128], index: 3, kind: input, shape index: {}]
  %s4 = inlined_call_operand.hbm [shape: bf16[256,256], index: 4, kind: input, shape index: {}]
  %s5 = inlined_call_operand.hbm [shape: bf16[256,128], index: 5, kind: input, shape index: {}]
  %s6 = inlined_call_operand.vmem [shape: f32[1,1280], index: 6, kind: input, shape index: {}]
  %s7 = inlined_call_operand.hbm [shape: f32[8,128], index: 7, kind: output, shape index: {}]
  %s8 = sld [smem:[#allocation0]]
  $region62: #{tpu_custom_call.1} parent=0
    _
  %s10 = ssub.s32 1, %s8
  %s11 = scalar_select 0, %s10, %s8
  $region1: #{tpu_custom_call.1} parent=0
    #allocation2 [shape = 'u8[2048]{0}', space=vmem, size = 0x800, scoped, tag = 'input window, operand 0, single buffered']
    #allocation3 [shape = 's32[1]{0}', space=sflag, size = 0x4, scoped, tag = 'scoped memory for tpu_custom_call.1']
    #allocation4 [shape = 's32[1]{0}', space=sflag, size = 0x4, scoped, tag = 'scoped memory for tpu_custom_call.1']
    #allocation5 [shape = 'u8[16384]{0}', space=vmem, size = 0x4000, scoped, tag = 'input window, operand 1, single buffered']
    #allocation6 [shape = 's32[1]{0}', space=sflag, size = 0x4, scoped, tag = 'scoped memory for tpu_custom_call.1']
    #allocation7 [shape = 'u8[131072]{0}', space=vmem, size = 0x20000, scoped, tag = 'input window, operand 2, single buffered']
    #allocation8 [shape = 'u8[65536]{0}', space=vmem, size = 0x10000, scoped, tag = 'input window, operand 3, single buffered']
    #allocation9 [shape = 's32[1]{0}', space=sflag, size = 0x4, scoped, tag = 'scoped memory for tpu_custom_call.1']
    #allocation10 [shape = 'u8[131072]{0}', space=vmem, size = 0x20000, scoped, tag = 'input window, operand 4, single buffered']
    #allocation11 [shape = 'u8[65536]{0}', space=vmem, size = 0x10000, scoped, tag = 'input window, operand 5, single buffered']
    #allocation12 [shape = 's32[1]{0}', space=sflag, size = 0x4, scoped, tag = 'scoped memory for tpu_custom_call.1']
    #allocation13 [shape = 'u8[4096]{0}', space=vmem, size = 0x1000, scoped, tag = 'output window, operand 0, single buffered']
    %12 = vsyncpa [#allocation3], 0
    %13 = vsyncpa [#allocation6], 0
    %14 = vsyncpa [#allocation9], 0
    %15 = vsyncpa [#allocation12], 0
    %16 = vsyncpa [#allocation4], 0
    // Predicated region
    $region2: #{tpu_custom_call.1} parent=1 // pred_check
      _
    $region3: #{tpu_custom_call.1} parent=1 // pred_check_branch
      %18 = sbr.rel (0) target = $region5
    $region4: #{tpu_custom_call.1} parent=1 // pred_region
      %s20 = ssub.s32 64, 64
      %21 = vsyncadd [#allocation3], %s20
      %s23 = sshll.u32 [#allocation2], 4
      %s24 = int_to_ptr.vmem [resolvable:$true] %s23
      %26 = dma.hbm_to_vmem [thread:$0]  %s0, 64, %s24, [#allocation3]
    $region5: #{tpu_custom_call.1} parent=1 // pred_fallthru
      _
    // Predicated region
    $region6: #{tpu_custom_call.1} parent=1 // pred_check
      _
    $region7: #{tpu_custom_call.1} parent=1 // pred_check_branch
      %28 = sbr.rel (0) target = $region9
    $region8: #{tpu_custom_call.1} parent=1 // pred_region
      %s30 = ssub.s32 512, 512
      %31 = vsyncadd [#allocation6], %s30
      %s32 = sshll.u32 [#allocation5], 4
      %s33 = int_to_ptr.vmem [resolvable:$true] %s32
      %38 = dma.hbm_to_vmem [thread:$0]  %s1, 512, %s33, [#allocation6], 256, 256, 16
    $region9: #{tpu_custom_call.1} parent=1 // pred_fallthru
      _
    // Predicated region
    $region10: #{tpu_custom_call.1} parent=1 // pred_check
      _
    $region11: #{tpu_custom_call.1} parent=1 // pred_check_branch
      %40 = sbr.rel (0) target = $region13
    $region12: #{tpu_custom_call.1} parent=1 // pred_region
      %s42 = ssub.s32 4096, 4096
      %43 = vsyncadd [#allocation6], %s42
      %s44 = sshll.u32 [#allocation7], 4
      %s45 = int_to_ptr.vmem [resolvable:$true] %s44
      %50 = dma.hbm_to_vmem [thread:$0]  %s2, 4096, %s45, [#allocation6], 128, 128, 8
    $region13: #{tpu_custom_call.1} parent=1 // pred_fallthru
      _
    // Predicated region
    $region14: #{tpu_custom_call.1} parent=1 // pred_check
      _
    $region15: #{tpu_custom_call.1} parent=1 // pred_check_branch
      %52 = sbr.rel (0) target = $region17
    $region16: #{tpu_custom_call.1} parent=1 // pred_region
      %s54 = ssub.s32 2048, 2048
      %55 = vsyncadd [#allocation9], %s54
      %s56 = sshll.u32 [#allocation8], 4
      %s57 = int_to_ptr.vmem [resolvable:$true] %s56
      %62 = dma.hbm_to_vmem [thread:$0]  %s3, 2048, %s57, [#allocation9], 64, 64, 4
    $region17: #{tpu_custom_call.1} parent=1 // pred_fallthru
      _
    // Predicated region
    $region18: #{tpu_custom_call.1} parent=1 // pred_check
      _
    $region19: #{tpu_custom_call.1} parent=1 // pred_check_branch
      %64 = sbr.rel (0) target = $region21
    $region20: #{tpu_custom_call.1} parent=1 // pred_region
      %s66 = ssub.s32 4096, 4096
      %67 = vsyncadd [#allocation9], %s66
      %s68 = sshll.u32 [#allocation10], 4
      %s69 = int_to_ptr.vmem [resolvable:$true] %s68
      %74 = dma.hbm_to_vmem [thread:$0]  %s4, 4096, %s69, [#allocation9], 128, 128, 8
    $region21: #{tpu_custom_call.1} parent=1 // pred_fallthru
      _
    // Predicated region
    $region22: #{tpu_custom_call.1} parent=1 // pred_check
      _
    $region23: #{tpu_custom_call.1} parent=1 // pred_check_branch
      %76 = sbr.rel (0) target = $region25
    $region24: #{tpu_custom_call.1} parent=1 // pred_region
      %s78 = ssub.s32 2048, 2048
      %79 = vsyncadd [#allocation12], %s78
      %s80 = sshll.u32 [#allocation11], 4
      %s81 = int_to_ptr.vmem [resolvable:$true] %s80
      %86 = dma.hbm_to_vmem [thread:$0]  %s5, 2048, %s81, [#allocation12], 64, 64, 4
    $region25: #{tpu_custom_call.1} parent=1 // pred_fallthru
      _
    // Predicated region
    $region26: #{tpu_custom_call.1} parent=1 // pred_check
      _
    $region27: #{tpu_custom_call.1} parent=1 // pred_check_branch
      %88 = sbr.rel (0) target = $region29
    $region28: #{tpu_custom_call.1} parent=1 // pred_region
      _
    $region29: #{tpu_custom_call.1} parent=1 // pred_fallthru
      _
    // Predicated region
    $region30: #{tpu_custom_call.1} parent=1 // pred_check
      _
    $region31: #{tpu_custom_call.1} parent=1 // pred_check_branch
      %90 = sbr.rel (0) target = $region33
    $region32: #{tpu_custom_call.1} parent=1 // pred_region
      %91 = dma.done [#allocation3], 64
    $region33: #{tpu_custom_call.1} parent=1 // pred_fallthru
      _
    // Predicated region
    $region34: #{tpu_custom_call.1} parent=1 // pred_check
      _
    $region35: #{tpu_custom_call.1} parent=1 // pred_check_branch
      %93 = sbr.rel (0) target = $region37
    $region36: #{tpu_custom_call.1} parent=1 // pred_region
      %94 = dma.done [#allocation6], 512
    $region37: #{tpu_custom_call.1} parent=1 // pred_fallthru
      _
    // Predicated region
    $region38: #{tpu_custom_call.1} parent=1 // pred_check
      _
    $region39: #{tpu_custom_call.1} parent=1 // pred_check_branch
      %96 = sbr.rel (0) target = $region41
    $region40: #{tpu_custom_call.1} parent=1 // pred_region
      %97 = dma.done [#allocation6], 4096
    $region41: #{tpu_custom_call.1} parent=1 // pred_fallthru
      _
    // Predicated region
    $region42: #{tpu_custom_call.1} parent=1 // pred_check
      _
    $region43: #{tpu_custom_call.1} parent=1 // pred_check_branch
      %99 = sbr.rel (0) target = $region45
    $region44: #{tpu_custom_call.1} parent=1 // pred_region
      %100 = dma.done [#allocation9], 2048
    $region45: #{tpu_custom_call.1} parent=1 // pred_fallthru
      _
    // Predicated region
    $region46: #{tpu_custom_call.1} parent=1 // pred_check
      _
    $region47: #{tpu_custom_call.1} parent=1 // pred_check_branch
      %102 = sbr.rel (0) target = $region49
    $region48: #{tpu_custom_call.1} parent=1 // pred_region
      %103 = dma.done [#allocation9], 4096
    $region49: #{tpu_custom_call.1} parent=1 // pred_fallthru
      _
    // Predicated region
    $region50: #{tpu_custom_call.1} parent=1 // pred_check
      _
    $region51: #{tpu_custom_call.1} parent=1 // pred_check_branch
      %105 = sbr.rel (0) target = $region53
    $region52: #{tpu_custom_call.1} parent=1 // pred_region
      %106 = dma.done [#allocation12], 2048
    $region53: #{tpu_custom_call.1} parent=1 // pred_fallthru
      _
    %v108 = vld [vmem:[#allocation2] sm:$0xf]
    %v109 = vld [vmem:[%s6] sm:$0xf]
    %v110 = vld [vmem:[%s6 + $0x4] sm:$0x3]
    %v111 = vld [vmem:[%s6 + $0x6] sm:$0x3]
    %v112 = vld [vmem:[%s6 + $0x8] sm:$0x1]
    %v113 = vld [vmem:[%s6 + $0x9] sm:$0x1]
    %v114 = vld [vmem:[#allocation5] sm:$0xff]
    %v115 = vld [vmem:[#allocation5 + $0x8] sm:$0xff]
    %v116 = vld [vmem:[#allocation5 + $0x10] sm:$0xff]
    %v117 = vld [vmem:[#allocation5 + $0x18] sm:$0xff]
    %v119 = vlaneseq
    %v120 = vshrl.u32 %v119, 7
    %v121 = vsub.s32 0, %v120
    %v122 = vrot.slane %v109, %v121
    %v123 = vlaneseq
    %v124 = vshrl.u32 %v123, 7
    %v125 = vsub.s32 1, %v124
    %v126 = vrot.slane %v109, %v125
    %v127 = vlaneseq
    %v128 = vshrl.u32 %v127, 7
    %v129 = vsub.s32 2, %v128
    %v130 = vrot.slane %v109, %v129
    %v131 = vlaneseq
    %v132 = vshrl.u32 %v131, 7
    %v133 = vsub.s32 3, %v132
    %v134 = vrot.slane %v109, %v133
    %v143 = vunpack.c.l.b16 %v114
    %v144 = vunpack.c.h.b16 %v114
    %v145 = vunpack.c.l.b16 %v115
    %v146 = vunpack.c.h.b16 %v115
    %v147 = vunpack.c.l.b16 %v116
    %v148 = vunpack.c.h.b16 %v116
    %v149 = vunpack.c.l.b16 %v117
    %v150 = vunpack.c.h.b16 %v117
    %v151 = vpack.c.b16 %v147, %v143
    %v152 = vpack.c.b16 %v148, %v144
    %v153 = vpack.c.b16 %v149, %v145
    %v154 = vpack.c.b16 %v150, %v146
    %vm159 = vcmask 130048
    %v161 = vsel %vm159, %v108, 0
    %163 = vmatprep.subr.bf16.mxu0 %v152
    %164 = vmatpush1.bf16.msra.mxu0 %v151
    %165 = vmatprep.subr.bf16.mxu0 0
    %166 = vmatpush1.bf16.msra.mxu0 0
    %167 = vmatprep.subr.bf16.mxu0 0
    %168 = vmatpush1.bf16.msra.mxu0 0
    %169 = vmatprep.subr.bf16.mxu0 0
    %170 = vmatpush1.bf16.msra.mxu0 0
    %171 = vmatprep.subr.bf16.mxu0 0
    %172 = vmatpush1.bf16.msra.mxu0 0
    %173 = vmatprep.subr.bf16.mxu0 0
    %174 = vmatpush1.bf16.msra.mxu0 0
    %175 = vmatprep.subr.bf16.mxu0 0
    %176 = vmatpush1.bf16.msra.mxu0 0
    %177 = vmatprep.subr.bf16.mxu0 0
    %178 = vmatpush1.bf16.msra.mxu0 0
    %179 = vmatprep.subr.bf16.mxu0 0
    %180 = vmatpush1.bf16.msra.mxu0 0
    %181 = vmatprep.subr.bf16.mxu0 0
    %182 = vmatpush1.bf16.msra.mxu0 0
    %183 = vmatprep.subr.bf16.mxu0 0
    %184 = vmatpush1.bf16.msra.mxu0 0
    %185 = vmatprep.subr.bf16.mxu0 0
    %186 = vmatpush1.bf16.msra.mxu0 0
    %187 = vmatprep.subr.bf16.mxu0 0
    %188 = vmatpush1.bf16.msra.mxu0 0
    %189 = vmatprep.subr.bf16.mxu0 0
    %190 = vmatpush1.bf16.msra.mxu0 0
    %191 = vmatprep.subr.bf16.mxu0 0
    %192 = vmatpush1.bf16.msra.mxu0 0
    %193 = vmatprep.subr.bf16.mxu0 0
    %194 = vmatpush1.bf16.msra.mxu0 0
    %195 = vmatprep.mubr.bf16.mxu0 0
    %196 = vmatmul.mubr.bf16.gmra.mrb[0].mxu0 %v161
    %v197 = vpop.f32.mrb[0].mxu0
    %v198 = vadd.f32 %v122, %v197
    %v199 = vpop.f32.mrb[0].mxu0
    %v200 = vadd.f32 %v126, %v199
    %v201 = vpop.f32.mrb[0].mxu0
    %v202 = vpop.f32.mrb[0].mxu0
    %203 = vdwg.mxu0
    %204 = vmatprep.subr.bf16.mxu0 %v154
    %205 = vmatpush1.bf16.msra.mxu0 %v153
    %206 = vmatprep.subr.bf16.mxu0 0
    %207 = vmatpush1.bf16.msra.mxu0 0
    %208 = vmatprep.subr.bf16.mxu0 0
    %209 = vmatpush1.bf16.msra.mxu0 0
    %210 = vmatprep.subr.bf16.mxu0 0
    %211 = vmatpush1.bf16.msra.mxu0 0
    %212 = vmatprep.subr.bf16.mxu0 0
    %213 = vmatpush1.bf16.msra.mxu0 0
    %214 = vmatprep.subr.bf16.mxu0 0
    %215 = vmatpush1.bf16.msra.mxu0 0
    %216 = vmatprep.subr.bf16.mxu0 0
    %217 = vmatpush1.bf16.msra.mxu0 0
    %218 = vmatprep.subr.bf16.mxu0 0
    %219 = vmatpush1.bf16.msra.mxu0 0
    %220 = vmatprep.subr.bf16.mxu0 0
    %221 = vmatpush1.bf16.msra.mxu0 0
    %222 = vmatprep.subr.bf16.mxu0 0
    %223 = vmatpush1.bf16.msra.mxu0 0
    %224 = vmatprep.subr.bf16.mxu0 0
    %225 = vmatpush1.bf16.msra.mxu0 0
    %226 = vmatprep.subr.bf16.mxu0 0
    %227 = vmatpush1.bf16.msra.mxu0 0
    %228 = vmatprep.subr.bf16.mxu0 0
    %229 = vmatpush1.bf16.msra.mxu0 0
    %230 = vmatprep.subr.bf16.mxu0 0
    %231 = vmatpush1.bf16.msra.mxu0 0
    %232 = vmatprep.subr.bf16.mxu0 0
    %233 = vmatpush1.bf16.msra.mxu0 0
    %234 = vmatprep.subr.bf16.mxu0 0
    %235 = vmatpush1.bf16.msra.mxu0 0
    %236 = vmatprep.mubr.bf16.mxu0 0
    %237 = vmatmul.mubr.bf16.gmra.mrb[0].mxu0 %v161
    %v238 = vpop.f32.mrb[0].mxu0
    %v239 = vadd.f32 %v130, %v238
    %v240 = vpop.f32.mrb[0].mxu0
    %v241 = vadd.f32 %v134, %v240
    %v242 = vpop.f32.mrb[0].mxu0
    %v243 = vpop.f32.mrb[0].mxu0
    %244 = vdwg.mxu0
    %v245 = vmax.f32 %v198, 0.0
    %v246 = vmax.f32 %v200, 0.0
    %v247 = vmax.f32 %v239, 0.0
    %v248 = vmax.f32 %v241, 0.0
    %v249 = vpack.c.bf16 %v245, %v245
    %v250 = vpack.c.bf16 %v246, %v246
    %v251 = vpack.c.bf16 %v247, %v247
    %v252 = vpack.c.bf16 %v248, %v248
    %v253 = vld [vmem:[#allocation7] sm:$0xff]
    %v254 = vld [vmem:[#allocation7 + $0x8] sm:$0xff]
    %v255 = vld [vmem:[#allocation7 + $0x10] sm:$0xff]
    %v256 = vld [vmem:[#allocation7 + $0x18] sm:$0xff]
    %v257 = vld [vmem:[#allocation7 + $0x20] sm:$0xff]
    %v258 = vld [vmem:[#allocation7 + $0x28] sm:$0xff]
    %v259 = vld [vmem:[#allocation7 + $0x30] sm:$0xff]
    %v260 = vld [vmem:[#allocation7 + $0x38] sm:$0xff]
    %v261 = vld [vmem:[#allocation7 + $0x40] sm:$0xff]
    %v262 = vld [vmem:[#allocation7 + $0x48] sm:$0xff]
    %v263 = vld [vmem:[#allocation7 + $0x50] sm:$0xff]
    %v264 = vld [vmem:[#allocation7 + $0x58] sm:$0xff]
    %v265 = vld [vmem:[#allocation7 + $0x60] sm:$0xff]
    %v266 = vld [vmem:[#allocation7 + $0x68] sm:$0xff]
    %v267 = vld [vmem:[#allocation7 + $0x70] sm:$0xff]
    %v268 = vld [vmem:[#allocation7 + $0x78] sm:$0xff]
    %v269 = vld [vmem:[#allocation7 + $0x80] sm:$0xff]
    %v270 = vld [vmem:[#allocation7 + $0x88] sm:$0xff]
    %v271 = vld [vmem:[#allocation7 + $0x90] sm:$0xff]
    %v272 = vld [vmem:[#allocation7 + $0x98] sm:$0xff]
    %v273 = vld [vmem:[#allocation7 + $0xa0] sm:$0xff]
    %v274 = vld [vmem:[#allocation7 + $0xa8] sm:$0xff]
    %v275 = vld [vmem:[#allocation7 + $0xb0] sm:$0xff]
    %v276 = vld [vmem:[#allocation7 + $0xb8] sm:$0xff]
    %v277 = vld [vmem:[#allocation7 + $0xc0] sm:$0xff]
    %v278 = vld [vmem:[#allocation7 + $0xc8] sm:$0xff]
    %v279 = vld [vmem:[#allocation7 + $0xd0] sm:$0xff]
    %v280 = vld [vmem:[#allocation7 + $0xd8] sm:$0xff]
    %v281 = vld [vmem:[#allocation7 + $0xe0] sm:$0xff]
    %v282 = vld [vmem:[#allocation7 + $0xe8] sm:$0xff]
    %v283 = vld [vmem:[#allocation7 + $0xf0] sm:$0xff]
    %v284 = vld [vmem:[#allocation7 + $0xf8] sm:$0xff]
    %v286 = vlaneseq
    %v287 = vshrl.u32 %v286, 7
    %v288 = vsub.s32 0, %v287
    %v289 = vrot.slane %v110, %v288
    %v290 = vlaneseq
    %v291 = vshrl.u32 %v290, 7
    %v292 = vsub.s32 1, %v291
    %v293 = vrot.slane %v110, %v292
    %v328 = vunpack.c.l.b16 %v253
    %v329 = vunpack.c.h.b16 %v253
    %v330 = vunpack.c.l.b16 %v254
    %v331 = vunpack.c.h.b16 %v254
    %v332 = vunpack.c.l.b16 %v255
    %v333 = vunpack.c.h.b16 %v255
    %v334 = vunpack.c.l.b16 %v256
    %v335 = vunpack.c.h.b16 %v256
    %v336 = vunpack.c.l.b16 %v257
    %v337 = vunpack.c.h.b16 %v257
    %v338 = vunpack.c.l.b16 %v258
    %v339 = vunpack.c.h.b16 %v258
    %v340 = vunpack.c.l.b16 %v259
    %v341 = vunpack.c.h.b16 %v259
    %v342 = vunpack.c.l.b16 %v260
    %v343 = vunpack.c.h.b16 %v260
    %v344 = vunpack.c.l.b16 %v261
    %v345 = vunpack.c.h.b16 %v261
    %v346 = vunpack.c.l.b16 %v262
    %v347 = vunpack.c.h.b16 %v262
    %v348 = vunpack.c.l.b16 %v263
    %v349 = vunpack.c.h.b16 %v263
    %v350 = vunpack.c.l.b16 %v264
    %v351 = vunpack.c.h.b16 %v264
    %v352 = vunpack.c.l.b16 %v265
    %v353 = vunpack.c.h.b16 %v265
    %v354 = vunpack.c.l.b16 %v266
    %v355 = vunpack.c.h.b16 %v266
    %v356 = vunpack.c.l.b16 %v267
    %v357 = vunpack.c.h.b16 %v267
    %v358 = vunpack.c.l.b16 %v268
    %v359 = vunpack.c.h.b16 %v268
    %v360 = vunpack.c.l.b16 %v269
    %v361 = vunpack.c.h.b16 %v269
    %v362 = vunpack.c.l.b16 %v270
    %v363 = vunpack.c.h.b16 %v270
    %v364 = vunpack.c.l.b16 %v271
    %v365 = vunpack.c.h.b16 %v271
    %v366 = vunpack.c.l.b16 %v272
    %v367 = vunpack.c.h.b16 %v272
    %v368 = vunpack.c.l.b16 %v273
    %v369 = vunpack.c.h.b16 %v273
    %v370 = vunpack.c.l.b16 %v274
    %v371 = vunpack.c.h.b16 %v274
    %v372 = vunpack.c.l.b16 %v275
    %v373 = vunpack.c.h.b16 %v275
    %v374 = vunpack.c.l.b16 %v276
    %v375 = vunpack.c.h.b16 %v276
    %v376 = vunpack.c.l.b16 %v277
    %v377 = vunpack.c.h.b16 %v277
    %v378 = vunpack.c.l.b16 %v278
    %v379 = vunpack.c.h.b16 %v278
    %v380 = vunpack.c.l.b16 %v279
    %v381 = vunpack.c.h.b16 %v279
    %v382 = vunpack.c.l.b16 %v280
    %v383 = vunpack.c.h.b16 %v280
    %v384 = vunpack.c.l.b16 %v281
    %v385 = vunpack.c.h.b16 %v281
    %v386 = vunpack.c.l.b16 %v282
    %v387 = vunpack.c.h.b16 %v282
    %v388 = vunpack.c.l.b16 %v283
    %v389 = vunpack.c.h.b16 %v283
    %v390 = vunpack.c.l.b16 %v284
    %v391 = vunpack.c.h.b16 %v284
    %v392 = vpack.c.b16 %v330, %v328
    %v393 = vpack.c.b16 %v331, %v329
    %v394 = vpack.c.b16 %v334, %v332
    %v395 = vpack.c.b16 %v335, %v333
    %v396 = vpack.c.b16 %v338, %v336
    %v397 = vpack.c.b16 %v339, %v337
    %v398 = vpack.c.b16 %v342, %v340
    %v399 = vpack.c.b16 %v343, %v341
    %v400 = vpack.c.b16 %v346, %v344
    %v401 = vpack.c.b16 %v347, %v345
    %v402 = vpack.c.b16 %v350, %v348
    %v403 = vpack.c.b16 %v351, %v349
    %v404 = vpack.c.b16 %v354, %v352
    %v405 = vpack.c.b16 %v355, %v353
    %v406 = vpack.c.b16 %v358, %v356
    %v407 = vpack.c.b16 %v359, %v357
    %v408 = vpack.c.b16 %v362, %v360
    %v409 = vpack.c.b16 %v363, %v361
    %v410 = vpack.c.b16 %v366, %v364
    %v411 = vpack.c.b16 %v367, %v365
    %v412 = vpack.c.b16 %v370, %v368
    %v413 = vpack.c.b16 %v371, %v369
    %v414 = vpack.c.b16 %v374, %v372
    %v415 = vpack.c.b16 %v375, %v373
    %v416 = vpack.c.b16 %v378, %v376
    %v417 = vpack.c.b16 %v379, %v377
    %v418 = vpack.c.b16 %v382, %v380
    %v419 = vpack.c.b16 %v383, %v381
    %v420 = vpack.c.b16 %v386, %v384
    %v421 = vpack.c.b16 %v387, %v385
    %v422 = vpack.c.b16 %v390, %v388
    %v423 = vpack.c.b16 %v391, %v389
    %456 = vmatprep.subr.bf16.mxu0 %v393
    %457 = vmatpush1.bf16.msra.mxu0 %v392
    %458 = vmatprep.subr.bf16.mxu0 %v395
    %459 = vmatpush1.bf16.msra.mxu0 %v394
    %460 = vmatprep.subr.bf16.mxu0 %v397
    %461 = vmatpush1.bf16.msra.mxu0 %v396
    %462 = vmatprep.subr.bf16.mxu0 %v399
    %463 = vmatpush1.bf16.msra.mxu0 %v398
    %464 = vmatprep.subr.bf16.mxu0 %v401
    %465 = vmatpush1.bf16.msra.mxu0 %v400
    %466 = vmatprep.subr.bf16.mxu0 %v403
    %467 = vmatpush1.bf16.msra.mxu0 %v402
    %468 = vmatprep.subr.bf16.mxu0 %v405
    %469 = vmatpush1.bf16.msra.mxu0 %v404
    %470 = vmatprep.subr.bf16.mxu0 %v407
    %471 = vmatpush1.bf16.msra.mxu0 %v406
    %472 = vmatprep.subr.bf16.mxu0 %v409
    %473 = vmatpush1.bf16.msra.mxu0 %v408
    %474 = vmatprep.subr.bf16.mxu0 %v411
    %475 = vmatpush1.bf16.msra.mxu0 %v410
    %476 = vmatprep.subr.bf16.mxu0 %v413
    %477 = vmatpush1.bf16.msra.mxu0 %v412
    %478 = vmatprep.subr.bf16.mxu0 %v415
    %479 = vmatpush1.bf16.msra.mxu0 %v414
    %480 = vmatprep.subr.bf16.mxu0 %v417
    %481 = vmatpush1.bf16.msra.mxu0 %v416
    %482 = vmatprep.subr.bf16.mxu0 %v419
    %483 = vmatpush1.bf16.msra.mxu0 %v418
    %484 = vmatprep.subr.bf16.mxu0 %v421
    %485 = vmatpush1.bf16.msra.mxu0 %v420
    %486 = vmatprep.subr.bf16.mxu0 %v423
    %487 = vmatpush1.bf16.msra.mxu0 %v422
    %488 = vmatprep.mubr.bf16.mxu0 %v250
    %489 = vmatmul.mubr.bf16.gmra.mrb[0].mxu0 %v249
    %v490 = vpop.f32.mrb[0].mxu0
    %v491 = vadd.f32 %v289, %v490
    %v492 = vpop.f32.mrb[0].mxu0
    %v493 = vadd.f32 %v293, %v492
    %v494 = vpop.f32.mrb[0].mxu0
    %v495 = vpop.f32.mrb[0].mxu0
    %496 = vdwg.mxu0
    %v497 = vmax.f32 %v491, 0.0
    %v498 = vmax.f32 %v493, 0.0
    %v499 = vpack.c.bf16 %v497, %v497
    %v500 = vpack.c.bf16 %v498, %v498
    %v501 = vld [vmem:[#allocation8] sm:$0xf]
    %v502 = vld [vmem:[#allocation8 + $0x4] sm:$0xf]
    %v503 = vld [vmem:[#allocation8 + $0x8] sm:$0xf]
    %v504 = vld [vmem:[#allocation8 + $0xc] sm:$0xf]
    %v505 = vld [vmem:[#allocation8 + $0x10] sm:$0xf]
    %v506 = vld [vmem:[#allocation8 + $0x14] sm:$0xf]
    %v507 = vld [vmem:[#allocation8 + $0x18] sm:$0xf]
    %v508 = vld [vmem:[#allocation8 + $0x1c] sm:$0xf]
    %v509 = vld [vmem:[#allocation8 + $0x20] sm:$0xf]
    %v510 = vld [vmem:[#allocation8 + $0x24] sm:$0xf]
    %v511 = vld [vmem:[#allocation8 + $0x28] sm:$0xf]
    %v512 = vld [vmem:[#allocation8 + $0x2c] sm:$0xf]
    %v513 = vld [vmem:[#allocation8 + $0x30] sm:$0xf]
    %v514 = vld [vmem:[#allocation8 + $0x34] sm:$0xf]
    %v515 = vld [vmem:[#allocation8 + $0x38] sm:$0xf]
    %v516 = vld [vmem:[#allocation8 + $0x3c] sm:$0xf]
    %v517 = vld [vmem:[#allocation8 + $0x40] sm:$0xf]
    %v518 = vld [vmem:[#allocation8 + $0x44] sm:$0xf]
    %v519 = vld [vmem:[#allocation8 + $0x48] sm:$0xf]
    %v520 = vld [vmem:[#allocation8 + $0x4c] sm:$0xf]
    %v521 = vld [vmem:[#allocation8 + $0x50] sm:$0xf]
    %v522 = vld [vmem:[#allocation8 + $0x54] sm:$0xf]
    %v523 = vld [vmem:[#allocation8 + $0x58] sm:$0xf]
    %v524 = vld [vmem:[#allocation8 + $0x5c] sm:$0xf]
    %v525 = vld [vmem:[#allocation8 + $0x60] sm:$0xf]
    %v526 = vld [vmem:[#allocation8 + $0x64] sm:$0xf]
    %v527 = vld [vmem:[#allocation8 + $0x68] sm:$0xf]
    %v528 = vld [vmem:[#allocation8 + $0x6c] sm:$0xf]
    %v529 = vld [vmem:[#allocation8 + $0x70] sm:$0xf]
    %v530 = vld [vmem:[#allocation8 + $0x74] sm:$0xf]
    %v531 = vld [vmem:[#allocation8 + $0x78] sm:$0xf]
    %v532 = vld [vmem:[#allocation8 + $0x7c] sm:$0xf]
    %v534 = vlaneseq
    %v535 = vshrl.u32 %v534, 7
    %v536 = vsub.s32 0, %v535
    %v537 = vrot.slane %v112, %v536
    %v571 = vunpack.c.l.b16 %v501
    %v572 = vunpack.c.l.b16 %v502
    %v573 = vunpack.c.l.b16 %v503
    %v574 = vunpack.c.l.b16 %v504
    %v575 = vunpack.c.l.b16 %v505
    %v576 = vunpack.c.l.b16 %v506
    %v577 = vunpack.c.l.b16 %v507
    %v578 = vunpack.c.l.b16 %v508
    %v579 = vunpack.c.l.b16 %v509
    %v580 = vunpack.c.l.b16 %v510
    %v581 = vunpack.c.l.b16 %v511
    %v582 = vunpack.c.l.b16 %v512
    %v583 = vunpack.c.l.b16 %v513
    %v584 = vunpack.c.l.b16 %v514
    %v585 = vunpack.c.l.b16 %v515
    %v586 = vunpack.c.l.b16 %v516
    %v587 = vunpack.c.l.b16 %v517
    %v588 = vunpack.c.l.b16 %v518
    %v589 = vunpack.c.l.b16 %v519
    %v590 = vunpack.c.l.b16 %v520
    %v591 = vunpack.c.l.b16 %v521
    %v592 = vunpack.c.l.b16 %v522
    %v593 = vunpack.c.l.b16 %v523
    %v594 = vunpack.c.l.b16 %v524
    %v595 = vunpack.c.l.b16 %v525
    %v596 = vunpack.c.l.b16 %v526
    %v597 = vunpack.c.l.b16 %v527
    %v598 = vunpack.c.l.b16 %v528
    %v599 = vunpack.c.l.b16 %v529
    %v600 = vunpack.c.l.b16 %v530
    %v601 = vunpack.c.l.b16 %v531
    %v602 = vunpack.c.l.b16 %v532
    %v603 = vpack.c.b16 %v572, %v571
    %v604 = vpack.c.b16 %v574, %v573
    %v605 = vpack.c.b16 %v576, %v575
    %v606 = vpack.c.b16 %v578, %v577
    %v607 = vpack.c.b16 %v580, %v579
    %v608 = vpack.c.b16 %v582, %v581
    %v609 = vpack.c.b16 %v584, %v583
    %v610 = vpack.c.b16 %v586, %v585
    %v611 = vpack.c.b16 %v588, %v587
    %v612 = vpack.c.b16 %v590, %v589
    %v613 = vpack.c.b16 %v592, %v591
    %v614 = vpack.c.b16 %v594, %v593
    %v615 = vpack.c.b16 %v596, %v595
    %v616 = vpack.c.b16 %v598, %v597
    %v617 = vpack.c.b16 %v600, %v599
    %v618 = vpack.c.b16 %v602, %v601
    %635 = vmatprep.subr.bf16.mxu0 0
    %636 = vmatpush1.bf16.msra.mxu0 %v603
    %637 = vmatprep.subr.bf16.mxu0 0
    %638 = vmatpush1.bf16.msra.mxu0 %v604
    %639 = vmatprep.subr.bf16.mxu0 0
    %640 = vmatpush1.bf16.msra.mxu0 %v605
    %641 = vmatprep.subr.bf16.mxu0 0
    %642 = vmatpush1.bf16.msra.mxu0 %v606
    %643 = vmatprep.subr.bf16.mxu0 0
    %644 = vmatpush1.bf16.msra.mxu0 %v607
    %645 = vmatprep.subr.bf16.mxu0 0
    %646 = vmatpush1.bf16.msra.mxu0 %v608
    %647 = vmatprep.subr.bf16.mxu0 0
    %648 = vmatpush1.bf16.msra.mxu0 %v609
    %649 = vmatprep.subr.bf16.mxu0 0
    %650 = vmatpush1.bf16.msra.mxu0 %v610
    %651 = vmatprep.subr.bf16.mxu0 0
    %652 = vmatpush1.bf16.msra.mxu0 %v611
    %653 = vmatprep.subr.bf16.mxu0 0
    %654 = vmatpush1.bf16.msra.mxu0 %v612
    %655 = vmatprep.subr.bf16.mxu0 0
    %656 = vmatpush1.bf16.msra.mxu0 %v613
    %657 = vmatprep.subr.bf16.mxu0 0
    %658 = vmatpush1.bf16.msra.mxu0 %v614
    %659 = vmatprep.subr.bf16.mxu0 0
    %660 = vmatpush1.bf16.msra.mxu0 %v615
    %661 = vmatprep.subr.bf16.mxu0 0
    %662 = vmatpush1.bf16.msra.mxu0 %v616
    %663 = vmatprep.subr.bf16.mxu0 0
    %664 = vmatpush1.bf16.msra.mxu0 %v617
    %665 = vmatprep.subr.bf16.mxu0 0
    %666 = vmatpush1.bf16.msra.mxu0 %v618
    %667 = vmatprep.mubr.bf16.mxu0 %v500
    %668 = vmatmul.mubr.bf16.gmra.mrb[0].mxu0 %v499
    %v669 = vpop.f32.mrb[0].mxu0
    %v670 = vadd.f32 %v537, %v669
    %v671 = vpop.f32.mrb[0].mxu0
    %v672 = vpop.f32.mrb[0].mxu0
    %v673 = vpop.f32.mrb[0].mxu0
    %674 = vdwg.mxu0
    %v675 = vld [vmem:[#allocation10] sm:$0xff]
    %v676 = vld [vmem:[#allocation10 + $0x8] sm:$0xff]
    %v677 = vld [vmem:[#allocation10 + $0x10] sm:$0xff]
    %v678 = vld [vmem:[#allocation10 + $0x18] sm:$0xff]
    %v679 = vld [vmem:[#allocation10 + $0x20] sm:$0xff]
    %v680 = vld [vmem:[#allocation10 + $0x28] sm:$0xff]
    %v681 = vld [vmem:[#allocation10 + $0x30] sm:$0xff]
    %v682 = vld [vmem:[#allocation10 + $0x38] sm:$0xff]
    %v683 = vld [vmem:[#allocation10 + $0x40] sm:$0xff]
    %v684 = vld [vmem:[#allocation10 + $0x48] sm:$0xff]
    %v685 = vld [vmem:[#allocation10 + $0x50] sm:$0xff]
    %v686 = vld [vmem:[#allocation10 + $0x58] sm:$0xff]
    %v687 = vld [vmem:[#allocation10 + $0x60] sm:$0xff]
    %v688 = vld [vmem:[#allocation10 + $0x68] sm:$0xff]
    %v689 = vld [vmem:[#allocation10 + $0x70] sm:$0xff]
    %v690 = vld [vmem:[#allocation10 + $0x78] sm:$0xff]
    %v691 = vld [vmem:[#allocation10 + $0x80] sm:$0xff]
    %v692 = vld [vmem:[#allocation10 + $0x88] sm:$0xff]
    %v693 = vld [vmem:[#allocation10 + $0x90] sm:$0xff]
    %v694 = vld [vmem:[#allocation10 + $0x98] sm:$0xff]
    %v695 = vld [vmem:[#allocation10 + $0xa0] sm:$0xff]
    %v696 = vld [vmem:[#allocation10 + $0xa8] sm:$0xff]
    %v697 = vld [vmem:[#allocation10 + $0xb0] sm:$0xff]
    %v698 = vld [vmem:[#allocation10 + $0xb8] sm:$0xff]
    %v699 = vld [vmem:[#allocation10 + $0xc0] sm:$0xff]
    %v700 = vld [vmem:[#allocation10 + $0xc8] sm:$0xff]
    %v701 = vld [vmem:[#allocation10 + $0xd0] sm:$0xff]
    %v702 = vld [vmem:[#allocation10 + $0xd8] sm:$0xff]
    %v703 = vld [vmem:[#allocation10 + $0xe0] sm:$0xff]
    %v704 = vld [vmem:[#allocation10 + $0xe8] sm:$0xff]
    %v705 = vld [vmem:[#allocation10 + $0xf0] sm:$0xff]
    %v706 = vld [vmem:[#allocation10 + $0xf8] sm:$0xff]
    %v708 = vlaneseq
    %v709 = vshrl.u32 %v708, 7
    %v710 = vsub.s32 0, %v709
    %v711 = vrot.slane %v111, %v710
    %v712 = vlaneseq
    %v713 = vshrl.u32 %v712, 7
    %v714 = vsub.s32 1, %v713
    %v715 = vrot.slane %v111, %v714
    %v750 = vunpack.c.l.b16 %v675
    %v751 = vunpack.c.h.b16 %v675
    %v752 = vunpack.c.l.b16 %v676
    %v753 = vunpack.c.h.b16 %v676
    %v754 = vunpack.c.l.b16 %v677
    %v755 = vunpack.c.h.b16 %v677
    %v756 = vunpack.c.l.b16 %v678
    %v757 = vunpack.c.h.b16 %v678
    %v758 = vunpack.c.l.b16 %v679
    %v759 = vunpack.c.h.b16 %v679
    %v760 = vunpack.c.l.b16 %v680
    %v761 = vunpack.c.h.b16 %v680
    %v762 = vunpack.c.l.b16 %v681
    %v763 = vunpack.c.h.b16 %v681
    %v764 = vunpack.c.l.b16 %v682
    %v765 = vunpack.c.h.b16 %v682
    %v766 = vunpack.c.l.b16 %v683
    %v767 = vunpack.c.h.b16 %v683
    %v768 = vunpack.c.l.b16 %v684
    %v769 = vunpack.c.h.b16 %v684
    %v770 = vunpack.c.l.b16 %v685
    %v771 = vunpack.c.h.b16 %v685
    %v772 = vunpack.c.l.b16 %v686
    %v773 = vunpack.c.h.b16 %v686
    %v774 = vunpack.c.l.b16 %v687
    %v775 = vunpack.c.h.b16 %v687
    %v776 = vunpack.c.l.b16 %v688
    %v777 = vunpack.c.h.b16 %v688
    %v778 = vunpack.c.l.b16 %v689
    %v779 = vunpack.c.h.b16 %v689
    %v780 = vunpack.c.l.b16 %v690
    %v781 = vunpack.c.h.b16 %v690
    %v782 = vunpack.c.l.b16 %v691
    %v783 = vunpack.c.h.b16 %v691
    %v784 = vunpack.c.l.b16 %v692
    %v785 = vunpack.c.h.b16 %v692
    %v786 = vunpack.c.l.b16 %v693
    %v787 = vunpack.c.h.b16 %v693
    %v788 = vunpack.c.l.b16 %v694
    %v789 = vunpack.c.h.b16 %v694
    %v790 = vunpack.c.l.b16 %v695
    %v791 = vunpack.c.h.b16 %v695
    %v792 = vunpack.c.l.b16 %v696
    %v793 = vunpack.c.h.b16 %v696
    %v794 = vunpack.c.l.b16 %v697
    %v795 = vunpack.c.h.b16 %v697
    %v796 = vunpack.c.l.b16 %v698
    %v797 = vunpack.c.h.b16 %v698
    %v798 = vunpack.c.l.b16 %v699
    %v799 = vunpack.c.h.b16 %v699
    %v800 = vunpack.c.l.b16 %v700
    %v801 = vunpack.c.h.b16 %v700
    %v802 = vunpack.c.l.b16 %v701
    %v803 = vunpack.c.h.b16 %v701
    %v804 = vunpack.c.l.b16 %v702
    %v805 = vunpack.c.h.b16 %v702
    %v806 = vunpack.c.l.b16 %v703
    %v807 = vunpack.c.h.b16 %v703
    %v808 = vunpack.c.l.b16 %v704
    %v809 = vunpack.c.h.b16 %v704
    %v810 = vunpack.c.l.b16 %v705
    %v811 = vunpack.c.h.b16 %v705
    %v812 = vunpack.c.l.b16 %v706
    %v813 = vunpack.c.h.b16 %v706
    %v814 = vpack.c.b16 %v752, %v750
    %v815 = vpack.c.b16 %v753, %v751
    %v816 = vpack.c.b16 %v756, %v754
    %v817 = vpack.c.b16 %v757, %v755
    %v818 = vpack.c.b16 %v760, %v758
    %v819 = vpack.c.b16 %v761, %v759
    %v820 = vpack.c.b16 %v764, %v762
    %v821 = vpack.c.b16 %v765, %v763
    %v822 = vpack.c.b16 %v768, %v766
    %v823 = vpack.c.b16 %v769, %v767
    %v824 = vpack.c.b16 %v772, %v770
    %v825 = vpack.c.b16 %v773, %v771
    %v826 = vpack.c.b16 %v776, %v774
    %v827 = vpack.c.b16 %v777, %v775
    %v828 = vpack.c.b16 %v780, %v778
    %v829 = vpack.c.b16 %v781, %v779
    %v830 = vpack.c.b16 %v784, %v782
    %v831 = vpack.c.b16 %v785, %v783
    %v832 = vpack.c.b16 %v788, %v786
    %v833 = vpack.c.b16 %v789, %v787
    %v834 = vpack.c.b16 %v792, %v790
    %v835 = vpack.c.b16 %v793, %v791
    %v836 = vpack.c.b16 %v796, %v794
    %v837 = vpack.c.b16 %v797, %v795
    %v838 = vpack.c.b16 %v800, %v798
    %v839 = vpack.c.b16 %v801, %v799
    %v840 = vpack.c.b16 %v804, %v802
    %v841 = vpack.c.b16 %v805, %v803
    %v842 = vpack.c.b16 %v808, %v806
    %v843 = vpack.c.b16 %v809, %v807
    %v844 = vpack.c.b16 %v812, %v810
    %v845 = vpack.c.b16 %v813, %v811
    %878 = vmatprep.subr.bf16.mxu0 %v815
    %879 = vmatpush1.bf16.msra.mxu0 %v814
    %880 = vmatprep.subr.bf16.mxu0 %v817
    %881 = vmatpush1.bf16.msra.mxu0 %v816
    %882 = vmatprep.subr.bf16.mxu0 %v819
    %883 = vmatpush1.bf16.msra.mxu0 %v818
    %884 = vmatprep.subr.bf16.mxu0 %v821
    %885 = vmatpush1.bf16.msra.mxu0 %v820
    %886 = vmatprep.subr.bf16.mxu0 %v823
    %887 = vmatpush1.bf16.msra.mxu0 %v822
    %888 = vmatprep.subr.bf16.mxu0 %v825
    %889 = vmatpush1.bf16.msra.mxu0 %v824
    %890 = vmatprep.subr.bf16.mxu0 %v827
    %891 = vmatpush1.bf16.msra.mxu0 %v826
    %892 = vmatprep.subr.bf16.mxu0 %v829
    %893 = vmatpush1.bf16.msra.mxu0 %v828
    %894 = vmatprep.subr.bf16.mxu0 %v831
    %895 = vmatpush1.bf16.msra.mxu0 %v830
    %896 = vmatprep.subr.bf16.mxu0 %v833
    %897 = vmatpush1.bf16.msra.mxu0 %v832
    %898 = vmatprep.subr.bf16.mxu0 %v835
    %899 = vmatpush1.bf16.msra.mxu0 %v834
    %900 = vmatprep.subr.bf16.mxu0 %v837
    %901 = vmatpush1.bf16.msra.mxu0 %v836
    %902 = vmatprep.subr.bf16.mxu0 %v839
    %903 = vmatpush1.bf16.msra.mxu0 %v838
    %904 = vmatprep.subr.bf16.mxu0 %v841
    %905 = vmatpush1.bf16.msra.mxu0 %v840
    %906 = vmatprep.subr.bf16.mxu0 %v843
    %907 = vmatpush1.bf16.msra.mxu0 %v842
    %908 = vmatprep.subr.bf16.mxu0 %v845
    %909 = vmatpush1.bf16.msra.mxu0 %v844
    %910 = vmatprep.mubr.bf16.mxu0 %v252
    %911 = vmatmul.mubr.bf16.gmra.mrb[0].mxu0 %v251
    %v912 = vpop.f32.mrb[0].mxu0
    %v913 = vadd.f32 %v711, %v912
    %v914 = vpop.f32.mrb[0].mxu0
    %v915 = vadd.f32 %v715, %v914
    %v916 = vpop.f32.mrb[0].mxu0
    %v917 = vpop.f32.mrb[0].mxu0
    %918 = vdwg.mxu0
    %v919 = vmax.f32 %v913, 0.0
    %v920 = vmax.f32 %v915, 0.0
    %v921 = vpack.c.bf16 %v919, %v919
    %v922 = vpack.c.bf16 %v920, %v920
    %v923 = vld [vmem:[#allocation11] sm:$0xf]
    %v924 = vld [vmem:[#allocation11 + $0x4] sm:$0xf]
    %v925 = vld [vmem:[#allocation11 + $0x8] sm:$0xf]
    %v926 = vld [vmem:[#allocation11 + $0xc] sm:$0xf]
    %v927 = vld [vmem:[#allocation11 + $0x10] sm:$0xf]
    %v928 = vld [vmem:[#allocation11 + $0x14] sm:$0xf]
    %v929 = vld [vmem:[#allocation11 + $0x18] sm:$0xf]
    %v930 = vld [vmem:[#allocation11 + $0x1c] sm:$0xf]
    %v931 = vld [vmem:[#allocation11 + $0x20] sm:$0xf]
    %v932 = vld [vmem:[#allocation11 + $0x24] sm:$0xf]
    %v933 = vld [vmem:[#allocation11 + $0x28] sm:$0xf]
    %v934 = vld [vmem:[#allocation11 + $0x2c] sm:$0xf]
    %v935 = vld [vmem:[#allocation11 + $0x30] sm:$0xf]
    %v936 = vld [vmem:[#allocation11 + $0x34] sm:$0xf]
    %v937 = vld [vmem:[#allocation11 + $0x38] sm:$0xf]
    %v938 = vld [vmem:[#allocation11 + $0x3c] sm:$0xf]
    %v939 = vld [vmem:[#allocation11 + $0x40] sm:$0xf]
    %v940 = vld [vmem:[#allocation11 + $0x44] sm:$0xf]
    %v941 = vld [vmem:[#allocation11 + $0x48] sm:$0xf]
    %v942 = vld [vmem:[#allocation11 + $0x4c] sm:$0xf]
    %v943 = vld [vmem:[#allocation11 + $0x50] sm:$0xf]
    %v944 = vld [vmem:[#allocation11 + $0x54] sm:$0xf]
    %v945 = vld [vmem:[#allocation11 + $0x58] sm:$0xf]
    %v946 = vld [vmem:[#allocation11 + $0x5c] sm:$0xf]
    %v947 = vld [vmem:[#allocation11 + $0x60] sm:$0xf]
    %v948 = vld [vmem:[#allocation11 + $0x64] sm:$0xf]
    %v949 = vld [vmem:[#allocation11 + $0x68] sm:$0xf]
    %v950 = vld [vmem:[#allocation11 + $0x6c] sm:$0xf]
    %v951 = vld [vmem:[#allocation11 + $0x70] sm:$0xf]
    %v952 = vld [vmem:[#allocation11 + $0x74] sm:$0xf]
    %v953 = vld [vmem:[#allocation11 + $0x78] sm:$0xf]
    %v954 = vld [vmem:[#allocation11 + $0x7c] sm:$0xf]
    %v956 = vlaneseq
    %v957 = vshrl.u32 %v956, 7
    %v958 = vsub.s32 0, %v957
    %v959 = vrot.slane %v113, %v958
    %v993 = vunpack.c.l.b16 %v923
    %v994 = vunpack.c.l.b16 %v924
    %v995 = vunpack.c.l.b16 %v925
    %v996 = vunpack.c.l.b16 %v926
    %v997 = vunpack.c.l.b16 %v927
    %v998 = vunpack.c.l.b16 %v928
    %v999 = vunpack.c.l.b16 %v929
    %v1000 = vunpack.c.l.b16 %v930
    %v1001 = vunpack.c.l.b16 %v931
    %v1002 = vunpack.c.l.b16 %v932
    %v1003 = vunpack.c.l.b16 %v933
    %v1004 = vunpack.c.l.b16 %v934
    %v1005 = vunpack.c.l.b16 %v935
    %v1006 = vunpack.c.l.b16 %v936
    %v1007 = vunpack.c.l.b16 %v937
    %v1008 = vunpack.c.l.b16 %v938
    %v1009 = vunpack.c.l.b16 %v939
    %v1010 = vunpack.c.l.b16 %v940
    %v1011 = vunpack.c.l.b16 %v941
    %v1012 = vunpack.c.l.b16 %v942
    %v1013 = vunpack.c.l.b16 %v943
    %v1014 = vunpack.c.l.b16 %v944
    %v1015 = vunpack.c.l.b16 %v945
    %v1016 = vunpack.c.l.b16 %v946
    %v1017 = vunpack.c.l.b16 %v947
    %v1018 = vunpack.c.l.b16 %v948
    %v1019 = vunpack.c.l.b16 %v949
    %v1020 = vunpack.c.l.b16 %v950
    %v1021 = vunpack.c.l.b16 %v951
    %v1022 = vunpack.c.l.b16 %v952
    %v1023 = vunpack.c.l.b16 %v953
    %v1024 = vunpack.c.l.b16 %v954
    %v1025 = vpack.c.b16 %v994, %v993
    %v1026 = vpack.c.b16 %v996, %v995
    %v1027 = vpack.c.b16 %v998, %v997
    %v1028 = vpack.c.b16 %v1000, %v999
    %v1029 = vpack.c.b16 %v1002, %v1001
    %v1030 = vpack.c.b16 %v1004, %v1003
    %v1031 = vpack.c.b16 %v1006, %v1005
    %v1032 = vpack.c.b16 %v1008, %v1007
    %v1033 = vpack.c.b16 %v1010, %v1009
    %v1034 = vpack.c.b16 %v1012, %v1011
    %v1035 = vpack.c.b16 %v1014, %v1013
    %v1036 = vpack.c.b16 %v1016, %v1015
    %v1037 = vpack.c.b16 %v1018, %v1017
    %v1038 = vpack.c.b16 %v1020, %v1019
    %v1039 = vpack.c.b16 %v1022, %v1021
    %v1040 = vpack.c.b16 %v1024, %v1023
    %1057 = vmatprep.subr.bf16.mxu0 0
    %1058 = vmatpush1.bf16.msra.mxu0 %v1025
    %1059 = vmatprep.subr.bf16.mxu0 0
    %1060 = vmatpush1.bf16.msra.mxu0 %v1026
    %1061 = vmatprep.subr.bf16.mxu0 0
    %1062 = vmatpush1.bf16.msra.mxu0 %v1027
    %1063 = vmatprep.subr.bf16.mxu0 0
    %1064 = vmatpush1.bf16.msra.mxu0 %v1028
    %1065 = vmatprep.subr.bf16.mxu0 0
    %1066 = vmatpush1.bf16.msra.mxu0 %v1029
    %1067 = vmatprep.subr.bf16.mxu0 0
    %1068 = vmatpush1.bf16.msra.mxu0 %v1030
    %1069 = vmatprep.subr.bf16.mxu0 0
    %1070 = vmatpush1.bf16.msra.mxu0 %v1031
    %1071 = vmatprep.subr.bf16.mxu0 0
    %1072 = vmatpush1.bf16.msra.mxu0 %v1032
    %1073 = vmatprep.subr.bf16.mxu0 0
    %1074 = vmatpush1.bf16.msra.mxu0 %v1033
    %1075 = vmatprep.subr.bf16.mxu0 0
    %1076 = vmatpush1.bf16.msra.mxu0 %v1034
    %1077 = vmatprep.subr.bf16.mxu0 0
    %1078 = vmatpush1.bf16.msra.mxu0 %v1035
    %1079 = vmatprep.subr.bf16.mxu0 0
    %1080 = vmatpush1.bf16.msra.mxu0 %v1036
    %1081 = vmatprep.subr.bf16.mxu0 0
    %1082 = vmatpush1.bf16.msra.mxu0 %v1037
    %1083 = vmatprep.subr.bf16.mxu0 0
    %1084 = vmatpush1.bf16.msra.mxu0 %v1038
    %1085 = vmatprep.subr.bf16.mxu0 0
    %1086 = vmatpush1.bf16.msra.mxu0 %v1039
    %1087 = vmatprep.subr.bf16.mxu0 0
    %1088 = vmatpush1.bf16.msra.mxu0 %v1040
    %1089 = vmatprep.mubr.bf16.mxu0 %v922
    %1090 = vmatmul.mubr.bf16.gmra.mrb[0].mxu0 %v921
    %v1091 = vpop.f32.mrb[0].mxu0
    %v1092 = vadd.f32 %v959, %v1091
    %v1093 = vpop.f32.mrb[0].mxu0
    %v1094 = vpop.f32.mrb[0].mxu0
    %v1095 = vpop.f32.mrb[0].mxu0
    %1096 = vdwg.mxu0
    %v1097 = vmax.f32 %v1092, 0.0
    %v1098 = vlaneseq
    %v1099 = vand.u32 %v1098, 127
    %vm1100 = vcmp.lt.s32.totalorder %v1099, 8
    %v1101 = vsel %vm1100, %v1097, -1e+30
    %1102 = vmax.xlane.f32.xlu0 %v1101
    %v1103 = vpop.xlane.xlu0 %1102
    %v1104 = vsub.f32 %v1101, %v1103
    %v1105 = vmul.f32 %v1104, 1.442695
    %v1106 = vpow.pop %v1105
    %1107 = vadd.xlane.f32.xlu0 %v1106
    %v1108 = vpop.xlane.xlu0 %1107
    %v1109 = vlog2.pop %v1108
    %v1110 = vmul.f32 %v1109, 0.6931472
    %v1111 = vsub.f32 %v1104, %v1110
    %vm1112 = vcmp.lt.s32.totalorder %v1099, 16
    %1113 = vrot.lane.b32.xlu0 %v1111, 8
    %v1114 = vpop.permute.xlu0 %1113
    %vm1115 = vcmp.lt.s32.totalorder %v1099, 24
    %1116 = vrot.lane.b32.xlu0 %v1097, 16
    %v1117 = vpop.permute.xlu0 %1116
    %v1118 = vsel %vm1115, %v1117, 0.0
    %v1119 = vsel %vm1112, %v1114, %v1118
    %v1120 = vsel %vm1100, %v670, %v1119
    %1121 = vst [vmem:[#allocation13] sm:$0xff] %v1120
    // Predicated region
    $region54: #{tpu_custom_call.1} parent=1 // pred_check
      _
    $region55: #{tpu_custom_call.1} parent=1 // pred_check_branch
      %1123 = sbr.rel (0) target = $region57
    $region56: #{tpu_custom_call.1} parent=1 // pred_region
      %s1125 = ssub.s32 128, 128
      %1126 = vsyncadd [#allocation4], %s1125
      %s1128 = sshll.u32 [#allocation13], 4
      %s1129 = int_to_ptr.vmem [resolvable:$true] %s1128
      %1131 = dma.vmem_to_hbm [thread:$0]  %s1129, 128, %s7, [#allocation4]
    $region57: #{tpu_custom_call.1} parent=1 // pred_fallthru
      _
    // Predicated region
    $region58: #{tpu_custom_call.1} parent=1 // pred_check
      _
    $region59: #{tpu_custom_call.1} parent=1 // pred_check_branch
      %1133 = sbr.rel (0) target = $region61
    $region60: #{tpu_custom_call.1} parent=1 // pred_region
      %1134 = dma.done [#allocation4], 128
    $region61: #{tpu_custom_call.1} parent=1 // pred_fallthru
      _
    %1135 = vsyncpa [#allocation3], 1
    %1136 = vsyncpa [#allocation6], 1
    %1137 = vsyncpa [#allocation9], 1
    %1138 = vsyncpa [#allocation12], 1
    %1139 = vsyncpa [#allocation4], 1

</llo_original>
